<compile_context>
chip_gen: v7x
topology: tpu7x:2x2x1
jax: 0.10.0
libtpu: 0.0.40
codegen_flags: <defaults>
</compile_context>

<pallas_src>
import jax
import jax.numpy as jnp
import numpy as np
from jax import lax
from jax.experimental import pallas as pl
from jax.experimental.pallas import tpu as pltpu

NUM_GROUPS = 3
GROUP_SIZE = 50
TOTAL = NUM_GROUPS * GROUP_SIZE  # 150


def _custom_loss_kernel(inp_ref, tgt_ref, out_ref):
    # inp_ref / tgt_ref: (1, 150) float32 in VMEM; out_ref: (1, 1) float32 in SMEM.
    x = inp_ref[...]                                   # (1, 150) logits
    t = tgt_ref[...]                                   # (1, 150) target scores

    col = lax.broadcasted_iota(jnp.int32, x.shape, 1)  # lane index 0..149
    neg_inf = jnp.float32(-jnp.inf)

    total = jnp.zeros((1, 1), dtype=jnp.float32)
    for g in range(NUM_GROUPS):                        # 3 static iterations
        lo = g * GROUP_SIZE
        hi = lo + GROUP_SIZE
        mask = (col >= lo) & (col < hi)                # (1, 150) group mask

        # --- log-softmax denominator over this group (numerically stable) ---
        m = jnp.max(jnp.where(mask, x, neg_inf), axis=1, keepdims=True)     # (1,1)
        e = jnp.exp(jnp.where(mask, x - m, neg_inf))   # exp(-inf)=0 off-group
        lse = jnp.log(jnp.sum(e, axis=1, keepdims=True))                    # (1,1)

        # --- torch.argmax over the flattened target slice (first max index) ---
        t_max = jnp.max(jnp.where(mask, t, neg_inf), axis=1, keepdims=True)
        is_max = mask & (t == t_max)
        idx = jnp.min(jnp.where(is_max, col, TOTAL), axis=1, keepdims=True)  # (1,1) int32

        # --- fused NLL: -logp[idx] = (m + lse) - x[idx] ---
        x_pick = jnp.sum(jnp.where(col == idx, x, 0.0), axis=1, keepdims=True)
        total = total + (m + lse - x_pick)

    out_ref[0, 0] = total[0, 0]


def custom_loss(inp, tgt):
    """inp, tgt: (1, 150) float32. Returns scalar float32 loss."""
    assert inp.shape == (1, TOTAL)
    assert tgt.shape == (1, TOTAL)
    out = pl.pallas_call(
        _custom_loss_kernel,
        out_shape=jax.ShapeDtypeStruct((1, 1), jnp.float32),
        in_specs=[
            pl.BlockSpec(memory_space=pltpu.MemorySpace.VMEM),
            pl.BlockSpec(memory_space=pltpu.MemorySpace.VMEM),
        ],
        out_specs=pl.BlockSpec(memory_space=pltpu.MemorySpace.SMEM),
    )(inp.astype(jnp.float32), tgt.astype(jnp.float32))
    return out[0, 0]


def _reference_loss(inp, tgt):
    """Pure-JAX reference mirroring the PyTorch forward (batch = 1)."""
    total = jnp.float32(0.0)
    for g in range(NUM_GROUPS):
        logits = inp[:, g * GROUP_SIZE:(g + 1) * GROUP_SIZE]   # (1, 50)
        target = tgt[:, g * GROUP_SIZE:(g + 1) * GROUP_SIZE]   # (1, 50)
        logp = jax.nn.log_softmax(logits, axis=1)
        idx = jnp.argmax(target.reshape(-1))                   # flattened argmax
        total = total + (-logp[0, idx])
    return total


if __name__ == "__main__":
    key = jax.random.PRNGKey(0)
    k1, k2 = jax.random.split(key)
    # batch = 1 (the PyTorch forward's flattened argmax implies a single row)
    inp = jax.random.normal(k1, (1, TOTAL), dtype=jnp.float32)
    tgt = jax.random.normal(k2, (1, TOTAL), dtype=jnp.float32)

    loss = jax.block_until_ready(custom_loss(inp, tgt))
    ref = jax.block_until_ready(_reference_loss(inp, tgt))
    np.testing.assert_allclose(np.asarray(loss), np.asarray(ref), rtol=1e-5, atol=1e-5)
    print("KERNEL_OK")
</pallas_src>

<mosaic_0001>
module attributes {stable_mosaic.version = 11 : i64} {
  func.func @_custom_loss_kernel(%arg0: memref<1x150xf32, #tpu.memory_space<vmem>>, %arg1: memref<1x150xf32, #tpu.memory_space<vmem>>, %arg2: memref<1x1xf32, #tpu.memory_space<smem>>) attributes {dimension_semantics = [], scalar_prefetch = 0 : i64, scratch_operands = 0 : i64, tpu.core_type = #tpu.core_type<tc>} {
    %c0 = arith.constant 0 : index
    %c0_0 = arith.constant 0 : index
    %0 = vector.load %arg0[%c0, %c0_0] : memref<1x150xf32, #tpu.memory_space<vmem>>, vector<1x150xf32>
    %c0_1 = arith.constant 0 : index
    %c0_2 = arith.constant 0 : index
    %1 = vector.load %arg1[%c0_1, %c0_2] : memref<1x150xf32, #tpu.memory_space<vmem>>, vector<1x150xf32>
    %2 = tpu.iota {dimensions = array<i32: 1>} : vector<1x150xi32>
    %cst = arith.constant 0.000000e+00 : f32
    %3 = vector.broadcast %cst : f32 to vector<1x1xf32>
    %c0_i32 = arith.constant 0 : i32
    %4 = vector.broadcast %c0_i32 : i32 to vector<1x150xi32>
    %5 = arith.cmpi sge, %2, %4 : vector<1x150xi32>
    %c50_i32 = arith.constant 50 : i32
    %6 = vector.broadcast %c50_i32 : i32 to vector<1x150xi32>
    %7 = arith.cmpi slt, %2, %6 : vector<1x150xi32>
    %8 = arith.andi %5, %7 : vector<1x150xi1>
    %cst_3 = arith.constant 0xFF800000 : f32
    %9 = vector.broadcast %cst_3 : f32 to vector<1x150xf32>
    %10 = arith.select %8, %0, %9 : vector<1x150xi1>, vector<1x150xf32>
    %cst_4 = arith.constant dense<0xFF800000> : vector<1xf32>
    %11 = vector.multi_reduction <maximumf>, %10, %cst_4 [1] : vector<1x150xf32> to vector<1xf32>
    %12 = vector.shape_cast %11 : vector<1xf32> to vector<1x1xf32>
    %13 = vector.broadcast %12 : vector<1x1xf32> to vector<1x150xf32>
    %14 = arith.subf %0, %13 : vector<1x150xf32>
    %cst_5 = arith.constant 0xFF800000 : f32
    %15 = vector.broadcast %cst_5 : f32 to vector<1x150xf32>
    %16 = arith.select %8, %14, %15 : vector<1x150xi1>, vector<1x150xf32>
    %17 = math.exp %16 : vector<1x150xf32>
    %cst_6 = arith.constant dense<0.000000e+00> : vector<1xf32>
    %18 = vector.multi_reduction <add>, %17, %cst_6 [1] : vector<1x150xf32> to vector<1xf32>
    %19 = vector.shape_cast %18 : vector<1xf32> to vector<1x1xf32>
    %20 = math.log %19 : vector<1x1xf32>
    %cst_7 = arith.constant 0xFF800000 : f32
    %21 = vector.broadcast %cst_7 : f32 to vector<1x150xf32>
    %22 = arith.select %8, %1, %21 : vector<1x150xi1>, vector<1x150xf32>
    %cst_8 = arith.constant dense<0xFF800000> : vector<1xf32>
    %23 = vector.multi_reduction <maximumf>, %22, %cst_8 [1] : vector<1x150xf32> to vector<1xf32>
    %24 = vector.shape_cast %23 : vector<1xf32> to vector<1x1xf32>
    %25 = vector.broadcast %24 : vector<1x1xf32> to vector<1x150xf32>
    %26 = arith.cmpf oeq, %1, %25 : vector<1x150xf32>
    %27 = arith.andi %8, %26 : vector<1x150xi1>
    %c150_i32 = arith.constant 150 : i32
    %28 = vector.broadcast %c150_i32 : i32 to vector<1x150xi32>
    %29 = arith.select %27, %2, %28 : vector<1x150xi1>, vector<1x150xi32>
    %cst_9 = arith.constant dense<2147483647> : vector<1xi32>
    %30 = vector.multi_reduction <minsi>, %29, %cst_9 [1] : vector<1x150xi32> to vector<1xi32>
    %31 = vector.shape_cast %30 : vector<1xi32> to vector<1x1xi32>
    %32 = vector.broadcast %31 : vector<1x1xi32> to vector<1x150xi32>
    %33 = arith.cmpi eq, %2, %32 : vector<1x150xi32>
    %cst_10 = arith.constant 0.000000e+00 : f32
    %34 = vector.broadcast %cst_10 : f32 to vector<1x150xf32>
    %35 = arith.select %33, %0, %34 : vector<1x150xi1>, vector<1x150xf32>
    %cst_11 = arith.constant dense<0.000000e+00> : vector<1xf32>
    %36 = vector.multi_reduction <add>, %35, %cst_11 [1] : vector<1x150xf32> to vector<1xf32>
    %37 = vector.shape_cast %36 : vector<1xf32> to vector<1x1xf32>
    %38 = arith.addf %12, %20 : vector<1x1xf32>
    %39 = arith.subf %38, %37 : vector<1x1xf32>
    %40 = arith.addf %3, %39 : vector<1x1xf32>
    %c50_i32_12 = arith.constant 50 : i32
    %41 = vector.broadcast %c50_i32_12 : i32 to vector<1x150xi32>
    %42 = arith.cmpi sge, %2, %41 : vector<1x150xi32>
    %c100_i32 = arith.constant 100 : i32
    %43 = vector.broadcast %c100_i32 : i32 to vector<1x150xi32>
    %44 = arith.cmpi slt, %2, %43 : vector<1x150xi32>
    %45 = arith.andi %42, %44 : vector<1x150xi1>
    %cst_13 = arith.constant 0xFF800000 : f32
    %46 = vector.broadcast %cst_13 : f32 to vector<1x150xf32>
    %47 = arith.select %45, %0, %46 : vector<1x150xi1>, vector<1x150xf32>
    %cst_14 = arith.constant dense<0xFF800000> : vector<1xf32>
    %48 = vector.multi_reduction <maximumf>, %47, %cst_14 [1] : vector<1x150xf32> to vector<1xf32>
    %49 = vector.shape_cast %48 : vector<1xf32> to vector<1x1xf32>
    %50 = vector.broadcast %49 : vector<1x1xf32> to vector<1x150xf32>
    %51 = arith.subf %0, %50 : vector<1x150xf32>
    %cst_15 = arith.constant 0xFF800000 : f32
    %52 = vector.broadcast %cst_15 : f32 to vector<1x150xf32>
    %53 = arith.select %45, %51, %52 : vector<1x150xi1>, vector<1x150xf32>
    %54 = math.exp %53 : vector<1x150xf32>
    %cst_16 = arith.constant dense<0.000000e+00> : vector<1xf32>
    %55 = vector.multi_reduction <add>, %54, %cst_16 [1] : vector<1x150xf32> to vector<1xf32>
    %56 = vector.shape_cast %55 : vector<1xf32> to vector<1x1xf32>
    %57 = math.log %56 : vector<1x1xf32>
    %cst_17 = arith.constant 0xFF800000 : f32
    %58 = vector.broadcast %cst_17 : f32 to vector<1x150xf32>
    %59 = arith.select %45, %1, %58 : vector<1x150xi1>, vector<1x150xf32>
    %cst_18 = arith.constant dense<0xFF800000> : vector<1xf32>
    %60 = vector.multi_reduction <maximumf>, %59, %cst_18 [1] : vector<1x150xf32> to vector<1xf32>
    %61 = vector.shape_cast %60 : vector<1xf32> to vector<1x1xf32>
    %62 = vector.broadcast %61 : vector<1x1xf32> to vector<1x150xf32>
    %63 = arith.cmpf oeq, %1, %62 : vector<1x150xf32>
    %64 = arith.andi %45, %63 : vector<1x150xi1>
    %c150_i32_19 = arith.constant 150 : i32
    %65 = vector.broadcast %c150_i32_19 : i32 to vector<1x150xi32>
    %66 = arith.select %64, %2, %65 : vector<1x150xi1>, vector<1x150xi32>
    %cst_20 = arith.constant dense<2147483647> : vector<1xi32>
    %67 = vector.multi_reduction <minsi>, %66, %cst_20 [1] : vector<1x150xi32> to vector<1xi32>
    %68 = vector.shape_cast %67 : vector<1xi32> to vector<1x1xi32>
    %69 = vector.broadcast %68 : vector<1x1xi32> to vector<1x150xi32>
    %70 = arith.cmpi eq, %2, %69 : vector<1x150xi32>
    %cst_21 = arith.constant 0.000000e+00 : f32
    %71 = vector.broadcast %cst_21 : f32 to vector<1x150xf32>
    %72 = arith.select %70, %0, %71 : vector<1x150xi1>, vector<1x150xf32>
    %cst_22 = arith.constant dense<0.000000e+00> : vector<1xf32>
    %73 = vector.multi_reduction <add>, %72, %cst_22 [1] : vector<1x150xf32> to vector<1xf32>
    %74 = vector.shape_cast %73 : vector<1xf32> to vector<1x1xf32>
    %75 = arith.addf %49, %57 : vector<1x1xf32>
    %76 = arith.subf %75, %74 : vector<1x1xf32>
    %77 = arith.addf %40, %76 : vector<1x1xf32>
    %c100_i32_23 = arith.constant 100 : i32
    %78 = vector.broadcast %c100_i32_23 : i32 to vector<1x150xi32>
    %79 = arith.cmpi sge, %2, %78 : vector<1x150xi32>
    %c150_i32_24 = arith.constant 150 : i32
    %80 = vector.broadcast %c150_i32_24 : i32 to vector<1x150xi32>
    %81 = arith.cmpi slt, %2, %80 : vector<1x150xi32>
    %82 = arith.andi %79, %81 : vector<1x150xi1>
    %cst_25 = arith.constant 0xFF800000 : f32
    %83 = vector.broadcast %cst_25 : f32 to vector<1x150xf32>
    %84 = arith.select %82, %0, %83 : vector<1x150xi1>, vector<1x150xf32>
    %cst_26 = arith.constant dense<0xFF800000> : vector<1xf32>
    %85 = vector.multi_reduction <maximumf>, %84, %cst_26 [1] : vector<1x150xf32> to vector<1xf32>
    %86 = vector.shape_cast %85 : vector<1xf32> to vector<1x1xf32>
    %87 = vector.broadcast %86 : vector<1x1xf32> to vector<1x150xf32>
    %88 = arith.subf %0, %87 : vector<1x150xf32>
    %cst_27 = arith.constant 0xFF800000 : f32
    %89 = vector.broadcast %cst_27 : f32 to vector<1x150xf32>
    %90 = arith.select %82, %88, %89 : vector<1x150xi1>, vector<1x150xf32>
    %91 = math.exp %90 : vector<1x150xf32>
    %cst_28 = arith.constant dense<0.000000e+00> : vector<1xf32>
    %92 = vector.multi_reduction <add>, %91, %cst_28 [1] : vector<1x150xf32> to vector<1xf32>
    %93 = vector.shape_cast %92 : vector<1xf32> to vector<1x1xf32>
    %94 = math.log %93 : vector<1x1xf32>
    %cst_29 = arith.constant 0xFF800000 : f32
    %95 = vector.broadcast %cst_29 : f32 to vector<1x150xf32>
    %96 = arith.select %82, %1, %95 : vector<1x150xi1>, vector<1x150xf32>
    %cst_30 = arith.constant dense<0xFF800000> : vector<1xf32>
    %97 = vector.multi_reduction <maximumf>, %96, %cst_30 [1] : vector<1x150xf32> to vector<1xf32>
    %98 = vector.shape_cast %97 : vector<1xf32> to vector<1x1xf32>
    %99 = vector.broadcast %98 : vector<1x1xf32> to vector<1x150xf32>
    %100 = arith.cmpf oeq, %1, %99 : vector<1x150xf32>
    %101 = arith.andi %82, %100 : vector<1x150xi1>
    %c150_i32_31 = arith.constant 150 : i32
    %102 = vector.broadcast %c150_i32_31 : i32 to vector<1x150xi32>
    %103 = arith.select %101, %2, %102 : vector<1x150xi1>, vector<1x150xi32>
    %cst_32 = arith.constant dense<2147483647> : vector<1xi32>
    %104 = vector.multi_reduction <minsi>, %103, %cst_32 [1] : vector<1x150xi32> to vector<1xi32>
    %105 = vector.shape_cast %104 : vector<1xi32> to vector<1x1xi32>
    %106 = vector.broadcast %105 : vector<1x1xi32> to vector<1x150xi32>
    %107 = arith.cmpi eq, %2, %106 : vector<1x150xi32>
    %cst_33 = arith.constant 0.000000e+00 : f32
    %108 = vector.broadcast %cst_33 : f32 to vector<1x150xf32>
    %109 = arith.select %107, %0, %108 : vector<1x150xi1>, vector<1x150xf32>
    %cst_34 = arith.constant dense<0.000000e+00> : vector<1xf32>
    %110 = vector.multi_reduction <add>, %109, %cst_34 [1] : vector<1x150xf32> to vector<1xf32>
    %111 = vector.shape_cast %110 : vector<1xf32> to vector<1x1xf32>
    %112 = arith.addf %86, %94 : vector<1x1xf32>
    %113 = arith.subf %112, %111 : vector<1x1xf32>
    %114 = arith.addf %77, %113 : vector<1x1xf32>
    %115 = vector.extract %114[0, 0] : f32 from vector<1x1xf32>
    %c0_35 = arith.constant 0 : index
    %c0_36 = arith.constant 0 : index
    %116 = memref.load %arg2[%c0_35, %c0_36] : memref<1x1xf32, #tpu.memory_space<smem>>
    memref.store %115, %arg2[%c0_35, %c0_36] : memref<1x1xf32, #tpu.memory_space<smem>>
    return
  }
}

</mosaic_0001>

<llo_original>
// kernel: tpu_custom_call.1
$region0: #{tpu_custom_call.1}
  #allocation0 [shape = 'u32[]', space=smem, size = 0x4, offset = 0x4, fixed_abs, tag = 'smem constant byte address 0x4 - core index']
  #allocation1 [shape = 'u32[144,128]{1,0:T(1,128)}', space=vmem, size = 0x12000, scoped, tag = 'internal scratch']
  %s0 = inlined_call_operand.hbm [shape: f32[1,150], index: 0, kind: input, shape index: {}]
  %s1 = inlined_call_operand.vmem [shape: f32[1,150], index: 1, kind: input, shape index: {}]
  %s2 = inlined_call_operand.hbm [shape: f32[1,1], index: 2, kind: output, shape index: {}]
  %s3 = sld [smem:[#allocation0]]
  $region22: #{tpu_custom_call.1} parent=0
    _
  %s5 = ssub.s32 1, %s3
  %s6 = scalar_select 0, %s5, %s3
  $region1: #{tpu_custom_call.1} parent=0
    #allocation2 [shape = 'u8[1024]{0}', space=vmem, size = 0x400, scoped, tag = 'input window, operand 0, single buffered']
    #allocation3 [shape = 's32[1]{0}', space=sflag, size = 0x4, scoped, tag = 'scoped memory for tpu_custom_call.1']
    #allocation4 [shape = 's32[1]{0}', space=sflag, size = 0x4, scoped, tag = 'scoped memory for tpu_custom_call.1']
    #allocation5 [shape = 'u8[512]{0}', space=smem, size = 0x200, scoped, tag = 'output window, operand 0, single buffered']
    %7 = vsyncpa [#allocation3], 0
    %8 = vsyncpa [#allocation4], 0
    // Predicated region
    $region2: #{tpu_custom_call.1} parent=1 // pred_check
      _
    $region3: #{tpu_custom_call.1} parent=1 // pred_check_branch
      %10 = sbr.rel (0) target = $region5
    $region4: #{tpu_custom_call.1} parent=1 // pred_region
      %s12 = ssub.s32 32, 32
      %13 = vsyncadd [#allocation3], %s12
      %s15 = sshll.u32 [#allocation2], 4
      %s16 = int_to_ptr.vmem [resolvable:$true] %s15
      %18 = dma.hbm_to_vmem [thread:$0]  %s0, 32, %s16, [#allocation3]
    $region5: #{tpu_custom_call.1} parent=1 // pred_fallthru
      _
    // Predicated region
    $region6: #{tpu_custom_call.1} parent=1 // pred_check
      _
    $region7: #{tpu_custom_call.1} parent=1 // pred_check_branch
      %20 = sbr.rel (0) target = $region9
    $region8: #{tpu_custom_call.1} parent=1 // pred_region
      _
    $region9: #{tpu_custom_call.1} parent=1 // pred_fallthru
      _
    // Predicated region
    $region10: #{tpu_custom_call.1} parent=1 // pred_check
      _
    $region11: #{tpu_custom_call.1} parent=1 // pred_check_branch
      %22 = sbr.rel (0) target = $region13
    $region12: #{tpu_custom_call.1} parent=1 // pred_region
      %23 = dma.done [#allocation3], 32
    $region13: #{tpu_custom_call.1} parent=1 // pred_fallthru
      _
    %v24 = vld [vmem:[#allocation2] sm:$0x3]
    %v25 = vld [vmem:[%s1] sm:$0x3]
    %v26 = vlaneseq
    %v27 = vand.u32 %v26, 127
    %v28 = vadd.s32 %v27, 128
    %vm29 = vcmp.ge.s32.totalorder %v27, 0
    %vm30 = vcmp.ge.s32.totalorder %v28, 0
    %vm31 = vcmp.lt.s32.totalorder %v27, 50
    %vm32 = vcmp.lt.s32.totalorder %v28, 50
    %vm33 = vmand %vm29, %vm31
    %vm34 = vmand %vm30, %vm32
    %v36 = vlaneseq
    %v37 = vshrl.u32 %v36, 7
    %v38 = vsub.s32 0, %v37
    %v39 = vrot.slane %v24, %v38
    %v40 = vlaneseq
    %v41 = vshrl.u32 %v40, 7
    %v42 = vsub.s32 1, %v41
    %v43 = vrot.slane %v24, %v42
    %v46 = vsel %vm33, %v39, -inf
    %v47 = vsel %vm34, %v43, -inf
    %vm48 = vcmask 1040384
    %v49 = vsel %vm48, %v46, -inf
    %vm50 = vcmask 172032
    %v51 = vsel %vm50, %v47, -inf
    %v52 = vmax.f32 %v49, %v51
    %53 = vmax.xlane.f32.xlu0 %v52
    %v54 = vpop.xlane.xlu0 %53
    %v56 = vlaneseq
    %v57 = vshrl.u32 %v56, 7
    %v58 = vsub.s32 0, %v57
    %v59 = vrot.slane %v54, %v58
    %v61 = vsub.f32 %v24, %v59
    %v63 = vlaneseq
    %v64 = vshrl.u32 %v63, 7
    %v65 = vsub.s32 0, %v64
    %v66 = vrot.slane %v61, %v65
    %v67 = vlaneseq
    %v68 = vshrl.u32 %v67, 7
    %v69 = vsub.s32 1, %v68
    %v70 = vrot.slane %v61, %v69
    %v73 = vsel %vm33, %v66, -inf
    %v74 = vsel %vm34, %v70, -inf
    %v75 = vmul.f32 %v73, 1.442695
    %v76 = vpow.pop %v75
    %v77 = vmul.f32 %v74, 1.442695
    %v78 = vpow.pop %v77
    %v79 = vsel %vm48, %v76, 0.0
    %v80 = vsel %vm50, %v78, 0.0
    %v81 = vadd.f32 %v79, %v80
    %82 = vadd.xlane.f32.xlu0 %v81
    %v83 = vpop.xlane.xlu0 %82
    %v84 = vlog2.pop %v83
    %v85 = vmul.f32 %v84, 0.6931472
    %v87 = vlaneseq
    %v88 = vshrl.u32 %v87, 7
    %v89 = vsub.s32 0, %v88
    %v90 = vrot.slane %v25, %v89
    %v91 = vlaneseq
    %v92 = vshrl.u32 %v91, 7
    %v93 = vsub.s32 1, %v92
    %v94 = vrot.slane %v25, %v93
    %v97 = vsel %vm33, %v90, -inf
    %v98 = vsel %vm34, %v94, -inf
    %v99 = vsel %vm48, %v97, -inf
    %v100 = vsel %vm50, %v98, -inf
    %v101 = vmax.f32 %v99, %v100
    %102 = vmax.xlane.f32.xlu0 %v101
    %v103 = vpop.xlane.xlu0 %102
    %v105 = vlaneseq
    %v106 = vshrl.u32 %v105, 7
    %v107 = vsub.s32 0, %v106
    %v108 = vrot.slane %v103, %v107
    %vm110 = vcmp.eq.f32.partialorder %v25, %v108
    %v111 = vsel %vm110, 1, 0
    %v112 = vlaneseq
    %v113 = vshrl.u32 %v112, 7
    %v114 = vsub.s32 0, %v113
    %v115 = vrot.slane %v111, %v114
    %v116 = vlaneseq
    %v117 = vshrl.u32 %v116, 7
    %v118 = vsub.s32 1, %v117
    %v119 = vrot.slane %v111, %v118
    %vm120 = vcmp.ne.s32.totalorder %v115, 0
    %vm121 = vcmp.ne.s32.totalorder %v119, 0
    %vm122 = vmand %vm33, %vm120
    %vm123 = vmand %vm34, %vm121
    %v124 = vsel %vm122, %v27, 150
    %v125 = vsel %vm123, %v28, 150
    %v126 = vsel %vm48, %v124, 2147483647
    %v127 = vsel %vm50, %v125, 2147483647
    %vm128 = vcmp.lt.s32.totalorder %v126, %v127
    %v129 = vsel %vm128, %v126, %v127
    %v130 = vand.u32 %v129, 65535
    %v131 = vshra.s32 %v129, 16
    %v132 = vcvt.s32.f32 %v130
    %v133 = vcvt.s32.f32 %v131
    %134 = vmin.xlane.f32.xlu0 %v133
    %v135 = vpop.xlane.xlu0 %134
    %vm136 = vcmp.eq.f32.partialorder %v133, %v135
    %v137 = vsel %vm136, %v132, inf
    %138 = vmin.xlane.f32.xlu0 %v137
    %v139 = vpop.xlane.xlu0 %138
    %v140 = vcvt.f32.s32 %v139
    %v141 = vcvt.f32.s32 %v135
    %v142 = vshll.u32 %v141, 16
    %v143 = vadd.s32 %v142, %v140
    %vm144 = vcmp.eq.s32.totalorder %v27, %v143
    %vm145 = vcmp.eq.s32.totalorder %v28, %v143
    %v146 = vsel %vm144, %v39, 0.0
    %v147 = vsel %vm145, %v43, 0.0
    %v148 = vsel %vm48, %v146, 0.0
    %v149 = vsel %vm50, %v147, 0.0
    %v150 = vadd.f32 %v148, %v149
    %151 = vadd.xlane.f32.xlu0 %v150
    %v152 = vpop.xlane.xlu0 %151
    %v153 = vadd.f32 %v54, %v85
    %v154 = vsub.f32 %v153, %v152
    %v155 = vadd.f32 %v154, 0.0
    %vm156 = vcmp.ge.s32.totalorder %v27, 50
    %vm157 = vcmp.ge.s32.totalorder %v28, 50
    %vm158 = vcmp.lt.s32.totalorder %v27, 100
    %vm159 = vcmp.lt.s32.totalorder %v28, 100
    %vm160 = vmand %vm156, %vm158
    %vm161 = vmand %vm157, %vm159
    %v162 = vsel %vm160, %v39, -inf
    %v163 = vsel %vm161, %v43, -inf
    %v164 = vsel %vm48, %v162, -inf
    %v165 = vsel %vm50, %v163, -inf
    %v166 = vmax.f32 %v164, %v165
    %167 = vmax.xlane.f32.xlu0 %v166
    %v168 = vpop.xlane.xlu0 %167
    %v170 = vlaneseq
    %v171 = vshrl.u32 %v170, 7
    %v172 = vsub.s32 0, %v171
    %v173 = vrot.slane %v168, %v172
    %v175 = vsub.f32 %v24, %v173
    %v177 = vlaneseq
    %v178 = vshrl.u32 %v177, 7
    %v179 = vsub.s32 0, %v178
    %v180 = vrot.slane %v175, %v179
    %v181 = vlaneseq
    %v182 = vshrl.u32 %v181, 7
    %v183 = vsub.s32 1, %v182
    %v184 = vrot.slane %v175, %v183
    %v187 = vsel %vm160, %v180, -inf
    %v188 = vsel %vm161, %v184, -inf
    %v189 = vmul.f32 %v187, 1.442695
    %v190 = vpow.pop %v189
    %v191 = vmul.f32 %v188, 1.442695
    %v192 = vpow.pop %v191
    %v193 = vsel %vm48, %v190, 0.0
    %v194 = vsel %vm50, %v192, 0.0
    %v195 = vadd.f32 %v193, %v194
    %196 = vadd.xlane.f32.xlu0 %v195
    %v197 = vpop.xlane.xlu0 %196
    %v198 = vlog2.pop %v197
    %v199 = vmul.f32 %v198, 0.6931472
    %v200 = vsel %vm160, %v90, -inf
    %v201 = vsel %vm161, %v94, -inf
    %v202 = vsel %vm48, %v200, -inf
    %v203 = vsel %vm50, %v201, -inf
    %v204 = vmax.f32 %v202, %v203
    %205 = vmax.xlane.f32.xlu0 %v204
    %v206 = vpop.xlane.xlu0 %205
    %v208 = vlaneseq
    %v209 = vshrl.u32 %v208, 7
    %v210 = vsub.s32 0, %v209
    %v211 = vrot.slane %v206, %v210
    %vm213 = vcmp.eq.f32.partialorder %v25, %v211
    %v214 = vsel %vm213, 1, 0
    %v215 = vlaneseq
    %v216 = vshrl.u32 %v215, 7
    %v217 = vsub.s32 0, %v216
    %v218 = vrot.slane %v214, %v217
    %v219 = vlaneseq
    %v220 = vshrl.u32 %v219, 7
    %v221 = vsub.s32 1, %v220
    %v222 = vrot.slane %v214, %v221
    %vm223 = vcmp.ne.s32.totalorder %v218, 0
    %vm224 = vcmp.ne.s32.totalorder %v222, 0
    %vm225 = vmand %vm160, %vm223
    %vm226 = vmand %vm161, %vm224
    %v227 = vsel %vm225, %v27, 150
    %v228 = vsel %vm226, %v28, 150
    %v229 = vsel %vm48, %v227, 2147483647
    %v230 = vsel %vm50, %v228, 2147483647
    %vm231 = vcmp.lt.s32.totalorder %v229, %v230
    %v232 = vsel %vm231, %v229, %v230
    %v233 = vand.u32 %v232, 65535
    %v234 = vshra.s32 %v232, 16
    %v235 = vcvt.s32.f32 %v233
    %v236 = vcvt.s32.f32 %v234
    %237 = vmin.xlane.f32.xlu0 %v236
    %v238 = vpop.xlane.xlu0 %237
    %vm239 = vcmp.eq.f32.partialorder %v236, %v238
    %v240 = vsel %vm239, %v235, inf
    %241 = vmin.xlane.f32.xlu0 %v240
    %v242 = vpop.xlane.xlu0 %241
    %v243 = vcvt.f32.s32 %v242
    %v244 = vcvt.f32.s32 %v238
    %v245 = vshll.u32 %v244, 16
    %v246 = vadd.s32 %v245, %v243
    %vm247 = vcmp.eq.s32.totalorder %v27, %v246
    %vm248 = vcmp.eq.s32.totalorder %v28, %v246
    %v249 = vsel %vm247, %v39, 0.0
    %v250 = vsel %vm248, %v43, 0.0
    %v251 = vsel %vm48, %v249, 0.0
    %v252 = vsel %vm50, %v250, 0.0
    %v253 = vadd.f32 %v251, %v252
    %254 = vadd.xlane.f32.xlu0 %v253
    %v255 = vpop.xlane.xlu0 %254
    %v256 = vadd.f32 %v168, %v199
    %v257 = vsub.f32 %v256, %v255
    %v258 = vadd.f32 %v155, %v257
    %vm259 = vcmp.ge.s32.totalorder %v27, 100
    %vm260 = vcmp.ge.s32.totalorder %v28, 100
    %vm261 = vcmp.lt.s32.totalorder %v27, 150
    %vm262 = vcmp.lt.s32.totalorder %v28, 150
    %vm263 = vmand %vm259, %vm261
    %vm264 = vmand %vm260, %vm262
    %v265 = vsel %vm263, %v39, -inf
    %v266 = vsel %vm264, %v43, -inf
    %v267 = vsel %vm48, %v265, -inf
    %v268 = vsel %vm50, %v266, -inf
    %v269 = vmax.f32 %v267, %v268
    %270 = vmax.xlane.f32.xlu0 %v269
    %v271 = vpop.xlane.xlu0 %270
    %v273 = vlaneseq
    %v274 = vshrl.u32 %v273, 7
    %v275 = vsub.s32 0, %v274
    %v276 = vrot.slane %v271, %v275
    %v278 = vsub.f32 %v24, %v276
    %v280 = vlaneseq
    %v281 = vshrl.u32 %v280, 7
    %v282 = vsub.s32 0, %v281
    %v283 = vrot.slane %v278, %v282
    %v284 = vlaneseq
    %v285 = vshrl.u32 %v284, 7
    %v286 = vsub.s32 1, %v285
    %v287 = vrot.slane %v278, %v286
    %v290 = vsel %vm263, %v283, -inf
    %v291 = vsel %vm264, %v287, -inf
    %v292 = vmul.f32 %v290, 1.442695
    %v293 = vpow.pop %v292
    %v294 = vmul.f32 %v291, 1.442695
    %v295 = vpow.pop %v294
    %v296 = vsel %vm48, %v293, 0.0
    %v297 = vsel %vm50, %v295, 0.0
    %v298 = vadd.f32 %v296, %v297
    %299 = vadd.xlane.f32.xlu0 %v298
    %v300 = vpop.xlane.xlu0 %299
    %v301 = vlog2.pop %v300
    %v302 = vmul.f32 %v301, 0.6931472
    %v303 = vsel %vm263, %v90, -inf
    %v304 = vsel %vm264, %v94, -inf
    %v305 = vsel %vm48, %v303, -inf
    %v306 = vsel %vm50, %v304, -inf
    %v307 = vmax.f32 %v305, %v306
    %308 = vmax.xlane.f32.xlu0 %v307
    %v309 = vpop.xlane.xlu0 %308
    %v311 = vlaneseq
    %v312 = vshrl.u32 %v311, 7
    %v313 = vsub.s32 0, %v312
    %v314 = vrot.slane %v309, %v313
    %vm316 = vcmp.eq.f32.partialorder %v25, %v314
    %v317 = vsel %vm316, 1, 0
    %v318 = vlaneseq
    %v319 = vshrl.u32 %v318, 7
    %v320 = vsub.s32 0, %v319
    %v321 = vrot.slane %v317, %v320
    %v322 = vlaneseq
    %v323 = vshrl.u32 %v322, 7
    %v324 = vsub.s32 1, %v323
    %v325 = vrot.slane %v317, %v324
    %vm326 = vcmp.ne.s32.totalorder %v321, 0
    %vm327 = vcmp.ne.s32.totalorder %v325, 0
    %vm328 = vmand %vm263, %vm326
    %vm329 = vmand %vm264, %vm327
    %v330 = vsel %vm328, %v27, 150
    %v331 = vsel %vm329, %v28, 150
    %v332 = vsel %vm48, %v330, 2147483647
    %v333 = vsel %vm50, %v331, 2147483647
    %vm334 = vcmp.lt.s32.totalorder %v332, %v333
    %v335 = vsel %vm334, %v332, %v333
    %v336 = vand.u32 %v335, 65535
    %v337 = vshra.s32 %v335, 16
    %v338 = vcvt.s32.f32 %v336
    %v339 = vcvt.s32.f32 %v337
    %340 = vmin.xlane.f32.xlu0 %v339
    %v341 = vpop.xlane.xlu0 %340
    %vm342 = vcmp.eq.f32.partialorder %v339, %v341
    %v343 = vsel %vm342, %v338, inf
    %344 = vmin.xlane.f32.xlu0 %v343
    %v345 = vpop.xlane.xlu0 %344
    %v346 = vcvt.f32.s32 %v345
    %v347 = vcvt.f32.s32 %v341
    %v348 = vshll.u32 %v347, 16
    %v349 = vadd.s32 %v348, %v346
    %vm350 = vcmp.eq.s32.totalorder %v27, %v349
    %vm351 = vcmp.eq.s32.totalorder %v28, %v349
    %v352 = vsel %vm350, %v39, 0.0
    %v353 = vsel %vm351, %v43, 0.0
    %v354 = vsel %vm48, %v352, 0.0
    %v355 = vsel %vm50, %v353, 0.0
    %v356 = vadd.f32 %v354, %v355
    %357 = vadd.xlane.f32.xlu0 %v356
    %v358 = vpop.xlane.xlu0 %357
    %v359 = vadd.f32 %v271, %v302
    %v360 = vsub.f32 %v359, %v358
    %v361 = vadd.f32 %v258, %v360
    %s362 = vtos %v361
    %s363 = scalar_lea.smem [#allocation5], 0
    %364 = sst [smem:[%s363]] %s362
    // Predicated region
    $region14: #{tpu_custom_call.1} parent=1 // pred_check
      _
    $region15: #{tpu_custom_call.1} parent=1 // pred_check_branch
      %366 = sbr.rel (0) target = $region17
    $region16: #{tpu_custom_call.1} parent=1 // pred_region
      %s368 = ssub.s32 16, 16
      %369 = vsyncadd [#allocation4], %s368
      %372 = dma.smem_to_hbm [#allocation5], 16, %s2, [#allocation4]
    $region17: #{tpu_custom_call.1} parent=1 // pred_fallthru
      _
    // Predicated region
    $region18: #{tpu_custom_call.1} parent=1 // pred_check
      _
    $region19: #{tpu_custom_call.1} parent=1 // pred_check_branch
      %374 = sbr.rel (0) target = $region21
    $region20: #{tpu_custom_call.1} parent=1 // pred_region
      %375 = dma.done [#allocation4], 16
    $region21: #{tpu_custom_call.1} parent=1 // pred_fallthru
      _
    %376 = sfence
    %377 = vsyncpa [#allocation3], 1
    %378 = vsyncpa [#allocation4], 1

</llo_original>
